<compile_context>
chip_gen: v5e
topology: v5e:2x2
jax: 0.10.0
libtpu: 0.0.40
codegen_flags: <defaults>
</compile_context>

<pallas_src>
import functools

import jax
import jax.numpy as jnp
from jax.experimental import pallas as pl
from jax.experimental.pallas import tpu as pltpu


def _round_up(x, m):
    return ((x + m - 1) // m) * m


def _apply_activation(y, activation):
    """Elementwise activation applied in f32 on the accumulator."""
    if activation is None:
        return y
    a = activation.lower()
    if a == "relu":
        return jnp.maximum(y, 0.0)
    if a == "sigmoid":
        return jax.nn.sigmoid(y)
    if a == "tanh":
        return jnp.tanh(y)
    if a == "leakyrelu":
        return jnp.where(y >= 0.0, y, 0.01 * y)  # PyTorch default negative_slope
    if a == "none":
        return y
    raise NotImplementedError(f"activation '{activation}' not supported in Pallas kernel")


# ----------------------------------------------------------------------------
# Hardware queries (safe fallbacks if unavailable).
# ----------------------------------------------------------------------------
def _device_kind():
    try:
        return jax.devices()[0].device_kind.lower()
    except Exception:
        return ""


def _num_tensorcores():
    # 2 TensorCores per chip on v4 / v5p (megacore) and v7x; 1 on v5e / v6e.
    kind = _device_kind()
    return 2 if any(v in kind for v in ("v4", "v5p", "v7")) else 1


def _vmem_capacity_bytes():
    try:
        cap = int(pltpu.get_tpu_info().vmem_capacity_bytes)
        if cap > 0:
            return cap
    except Exception:
        pass
    kind = _device_kind()
    if "v7" in kind:
        return 64 * 1024 * 1024
    return 128 * 1024 * 1024


# ----------------------------------------------------------------------------
# Kernel
# ----------------------------------------------------------------------------
def _fused_mlp_kernel(*refs, num_layers, activation):
    # refs = [x_ref, w0, b0, w1, b1, ..., w_{L-1}, b_{L-1}, o_ref]
    # x_ref: (tm, H0)  w_l: (P_l, P_{l+1}) bf16  b_l: (1, P_{l+1}) f32
    # o_ref: (tm, P_L)
    x_ref = refs[0]
    o_ref = refs[-1]
    h = x_ref[...].astype(jnp.float32)
    for l in range(num_layers):
        w = refs[1 + 2 * l][...]
        b = refs[2 + 2 * l][...]
        # bf16 MXU matmul with f32 accumulation; bias/activation epilogue in f32.
        y = jnp.dot(h.astype(w.dtype), w, preferred_element_type=jnp.float32)
        y = y + b.astype(jnp.float32)
        h = _apply_activation(y, activation)
    o_ref[...] = h.astype(o_ref.dtype)


# Lazily-probed: whether pipeline_mode=pl.Buffered(1) (single-buffered constant
# weight blocks) is accepted by this jax/Mosaic build.
_WEIGHT_SINGLE_BUFFER = None


def mlp_forward_fused(x2, params, activation="relu"):
    """Fused MLP over all layers.

    x2:     (N, H0) activations (H0 = first value of `layers`, unpadded).
    params: list of (w, b) with w of shape (P_in, P_out) (pre-transposed and
            zero-padded to 128-multiples on hidden/output dims, bf16) and
            b of shape (1, P_out) (f32, zero-padded).
    Returns (N, P_last); caller slices off the padded output lanes.
    """
    global _WEIGHT_SINGLE_BUFFER
    N, H0 = x2.shape
    assert params, "need at least one layer"
    assert params[0][0].shape[0] == H0
    H_out_pad = params[-1][0].shape[1]
    out_dtype = x2.dtype
    dims = [H0] + [w.shape[1] for (w, _) in params]

    # ---- generation-aware tile / VMEM budget -------------------------------
    vmem_cap = _vmem_capacity_bytes()
    vmem_budget = int(0.8 * vmem_cap)
    n_tc = _num_tensorcores()

    tm_target = 1024 if vmem_cap >= 96 * 1024 * 1024 else 512
    tm = min(_round_up(tm_target, 16), _round_up(max(N, 1), 16))
    if n_tc >= 2:
        # Keep >= n_tc grid steps so both TensorCores get batch work; single-TC
        # chips keep one large tile (grid is a serial loop there).
        while pl.cdiv(N, tm) < n_tc and tm > 16:
            tm = _round_up(pl.cdiv(tm, 2), 16)

    def vmem_est(tile_m):
        est = 2 * tile_m * H0 * x2.dtype.itemsize                     # x tile (2x buffered)
        est += 2 * tile_m * H_out_pad * jnp.dtype(out_dtype).itemsize  # out tile
        est += 2 * sum(w.size * w.dtype.itemsize + b.size * b.dtype.itemsize
                       for (w, b) in params)                          # weights (worst case 2x)
        est += sum(tile_m * d * 4 for d in dims[1:])                  # f32 intermediates
        est += 2 * tile_m * max(dims) * 4                             # headroom
        return est

    while vmem_est(tm) > vmem_budget and tm > 16:
        tm = _round_up(tm // 2, 16)

    grid_m = pl.cdiv(N, tm)
    vmem_limit = int(min(max(2 * vmem_est(tm), 32 * 1024 * 1024), vmem_budget))

    # ---- cost estimate ------------------------------------------------------
    flops = 2 * N * sum(w.shape[0] * w.shape[1] for (w, _) in params)
    if activation is not None and str(activation).lower() in ("sigmoid", "tanh"):
        transcendentals = N * sum(w.shape[1] for (w, _) in params)
    else:
        transcendentals = 0
    bytes_accessed = (x2.size * x2.dtype.itemsize
                      + sum(w.size * w.dtype.itemsize + b.size * b.dtype.itemsize
                            for (w, b) in params)
                      + N * H_out_pad * jnp.dtype(out_dtype).itemsize)
    cost = pl.CostEstimate(flops=flops, transcendentals=transcendentals,
                           bytes_accessed=bytes_accessed)

    flat_args = [x2]
    for (w, b) in params:
        flat_args.extend([w, b])

    kernel = functools.partial(_fused_mlp_kernel, num_layers=len(params),
                               activation=activation)

    def run(single_buffer_weights):
        in_specs = [pl.BlockSpec((tm, H0), lambda i: (i, 0))]
        for (w, b) in params:
            h_in, h_out = w.shape
            if single_buffer_weights:
                # Constant index_map: block never changes across the batch grid,
                # so one VMEM buffer suffices (halves weight residency).
                in_specs.append(pl.BlockSpec((h_in, h_out), lambda i: (0, 0),
                                             pipeline_mode=pl.Buffered(1)))
                in_specs.append(pl.BlockSpec((1, h_out), lambda i: (0, 0),
                                             pipeline_mode=pl.Buffered(1)))
            else:
                in_specs.append(pl.BlockSpec((h_in, h_out), lambda i: (0, 0)))
                in_specs.append(pl.BlockSpec((1, h_out), lambda i: (0, 0)))
        out_specs = pl.BlockSpec((tm, H_out_pad), lambda i: (i, 0))
        return pl.pallas_call(
            kernel,
            out_shape=jax.ShapeDtypeStruct((N, H_out_pad), out_dtype),
            grid=(grid_m,),
            in_specs=in_specs,
            out_specs=out_specs,
            compiler_params=pltpu.CompilerParams(
                dimension_semantics=("parallel",),
                vmem_limit_bytes=vmem_limit,
            ),
            cost_estimate=cost,
        )(*flat_args)

    if _WEIGHT_SINGLE_BUFFER is None:
        try:
            out = run(True)
            _WEIGHT_SINGLE_BUFFER = True
        except Exception:
            _WEIGHT_SINGLE_BUFFER = False
            out = run(False)
    else:
        out = run(_WEIGHT_SINGLE_BUFFER)
    return out


# ----------------------------------------------------------------------------
# Module wrapper
# ----------------------------------------------------------------------------
class MLPLayersPallas:
    """JAX/Pallas re-implementation of RecBole's MLPLayers (inference mode)."""

    def __init__(self, layers, dropout=0.0, activation="relu", key=None,
                 dtype=jnp.float32, weight_dtype=jnp.bfloat16):
        self.layers = list(layers)
        self.dropout = dropout          # inference: identity (no-op)
        self.activation = activation
        self.out_features = self.layers[-1]
        if key is None:
            key = jax.random.PRNGKey(0)
        self.params = []  # list of (w (P_in, P_out) bf16, b (1, P_out) f32)
        in_pad = self.layers[0]  # keep H0 unpadded -> no runtime pad of x
        for in_size, out_size in zip(self.layers[:-1], self.layers[1:]):
            key, kw, kb = jax.random.split(key, 3)
            # nn.Linear default init: uniform(-1/sqrt(in), 1/sqrt(in)).
            bound = 1.0 / (in_size ** 0.5)
            w = jax.random.uniform(kw, (out_size, in_size), dtype,
                                   minval=-bound, maxval=bound)
            b = jax.random.uniform(kb, (out_size,), dtype,
                                   minval=-bound, maxval=bound)
            out_pad = _round_up(out_size, 128)
            # Zero-padded rows AND cols: lane-dense blocks, and zero rows kill
            # any non-zero activation living in padded hidden units.
            w_t = jnp.zeros((in_pad, out_pad), dtype)
            w_t = w_t.at[:in_size, :out_size].set(w.T)
            b2 = jnp.zeros((1, out_pad), jnp.float32)
            b2 = b2.at[0, :out_size].set(b.astype(jnp.float32))
            # TODO(synk): optional fp8 weights + per-layer scale on v7x.
            self.params.append((w_t.astype(weight_dtype), b2))
            in_pad = out_pad

    def __call__(self, x):
        # Input may be (N, *, H_in); flatten leading dims, apply MLP, restore.
        orig_shape = x.shape
        h_in = orig_shape[-1]
        assert h_in == self.layers[0]
        x2 = x.reshape(-1, h_in)
        y2 = mlp_forward_fused(x2, self.params, activation=self.activation)
        y2 = y2[:, :self.out_features]  # drop zero-padded output lanes
        return y2.reshape(orig_shape[:-1] + (self.out_features,))


# ----------------------------------------------------------------------------
# Pure-JAX reference (mimics the kernel's bf16 input cast for tight tolerance)
# ----------------------------------------------------------------------------
def _reference(x, params, activation, out_features):
    x2 = x.reshape(-1, x.shape[-1]).astype(jnp.float32)
    for (w, b) in params:
        xw = x2.astype(w.dtype).astype(jnp.float32)
        x2 = xw @ w.astype(jnp.float32) + b.astype(jnp.float32)
        x2 = _apply_activation(x2, activation)
    x2 = x2[:, :out_features]
    return x2.reshape(x.shape[:-1] + (out_features,))


if __name__ == "__main__":
    key = jax.random.PRNGKey(0)
    k_in, k_in3, k_model = jax.random.split(key, 3)

    # Matches the MLPLayers docstring example: m = MLPLayers([64, 32, 16], 0.2, 'relu')
    layers = [64, 32, 16]
    mlp = MLPLayersPallas(layers, dropout=0.2, activation="relu", key=k_model)

    # (N, H_in) input
    N = 128
    x = jax.random.normal(k_in, (N, layers[0]), dtype=jnp.float32)
    out = jax.block_until_ready(mlp(x))
    ref = _reference(x, mlp.params, "relu", layers[-1])
    assert out.shape == (N, layers[-1]), out.shape
    assert jnp.allclose(out, ref, atol=5e-3, rtol=5e-3), "mismatch vs reference (2D)"

    # (N, *, H_in) input with a batch that is NOT a multiple of the tile size
    # (exercises the ragged final block and the reshape plumbing).
    x3 = jax.random.normal(k_in3, (3, 7, layers[0]), dtype=jnp.float32)
    out3 = jax.block_until_ready(mlp(x3))
    ref3 = _reference(x3, mlp.params, "relu", layers[-1])
    assert out3.shape == (3, 7, layers[-1]), out3.shape
    assert jnp.allclose(out3, ref3, atol=5e-3, rtol=5e-3), "mismatch vs reference (3D)"

    print("KERNEL_OK")
</pallas_src>

<mosaic_0001>
module attributes {stable_mosaic.version = 11 : i64} {
  func.func @_fused_mlp_kernel(%arg0: i32, %arg1: memref<128x64xf32, #tpu.memory_space<vmem>>, %arg2: memref<64x128xbf16, #tpu.memory_space<vmem>>, %arg3: memref<1x128xf32, #tpu.memory_space<vmem>>, %arg4: memref<128x128xbf16, #tpu.memory_space<vmem>>, %arg5: memref<1x128xf32, #tpu.memory_space<vmem>>, %arg6: memref<128x128xf32, #tpu.memory_space<vmem>>) attributes {dimension_semantics = [#tpu.dimension_semantics<parallel>], iteration_bounds = array<i64: 1>, scalar_prefetch = 0 : i64, scratch_operands = 0 : i64, tpu.core_type = #tpu.core_type<tc>, window_params = [{transform_indices = @transform_0, window_bounds = array<i64: 128, 64>}, {pipeline_mode = #tpu.pipeline_mode<synchronous>, transform_indices = @transform_1, window_bounds = array<i64: 64, 128>}, {pipeline_mode = #tpu.pipeline_mode<synchronous>, transform_indices = @transform_2, window_bounds = array<i64: 1, 128>}, {pipeline_mode = #tpu.pipeline_mode<synchronous>, transform_indices = @transform_3, window_bounds = array<i64: 128, 128>}, {pipeline_mode = #tpu.pipeline_mode<synchronous>, transform_indices = @transform_4, window_bounds = array<i64: 1, 128>}, {transform_indices = @transform_5, window_bounds = array<i64: 128, 128>}]} {
    %c0 = arith.constant 0 : index
    %c0_0 = arith.constant 0 : index
    %0 = vector.load %arg1[%c0, %c0_0] : memref<128x64xf32, #tpu.memory_space<vmem>>, vector<128x64xf32>
    %c0_1 = arith.constant 0 : index
    %c0_2 = arith.constant 0 : index
    %1 = vector.load %arg2[%c0_1, %c0_2] : memref<64x128xbf16, #tpu.memory_space<vmem>>, vector<64x128xbf16>
    %c0_3 = arith.constant 0 : index
    %c0_4 = arith.constant 0 : index
    %2 = vector.load %arg3[%c0_3, %c0_4] : memref<1x128xf32, #tpu.memory_space<vmem>>, vector<1x128xf32>
    %3 = arith.truncf %0 : vector<128x64xf32> to vector<128x64xbf16>
    %cst = arith.constant dense<0.000000e+00> : vector<128x128xf32>
    %4 = tpu.matmul %3, %1, %cst {dimension_numbers = #tpu.dot_dimension_numbers<[1], [0], [0], [1], [0, 0, 1, 1], [], []>} : vector<128x64xbf16>, vector<64x128xbf16>, vector<128x128xf32> -> vector<128x128xf32>
    %5 = vector.broadcast %2 : vector<1x128xf32> to vector<128x128xf32>
    %6 = arith.addf %4, %5 : vector<128x128xf32>
    %cst_5 = arith.constant 0.000000e+00 : f32
    %7 = vector.broadcast %cst_5 : f32 to vector<128x128xf32>
    %8 = arith.maximumf %6, %7 : vector<128x128xf32>
    %c0_6 = arith.constant 0 : index
    %c0_7 = arith.constant 0 : index
    %9 = vector.load %arg4[%c0_6, %c0_7] : memref<128x128xbf16, #tpu.memory_space<vmem>>, vector<128x128xbf16>
    %c0_8 = arith.constant 0 : index
    %c0_9 = arith.constant 0 : index
    %10 = vector.load %arg5[%c0_8, %c0_9] : memref<1x128xf32, #tpu.memory_space<vmem>>, vector<1x128xf32>
    %11 = arith.truncf %8 : vector<128x128xf32> to vector<128x128xbf16>
    %cst_10 = arith.constant dense<0.000000e+00> : vector<128x128xf32>
    %12 = tpu.matmul %11, %9, %cst_10 {dimension_numbers = #tpu.dot_dimension_numbers<[1], [0], [0], [1], [0, 0, 1, 1], [], []>} : vector<128x128xbf16>, vector<128x128xbf16>, vector<128x128xf32> -> vector<128x128xf32>
    %13 = vector.broadcast %10 : vector<1x128xf32> to vector<128x128xf32>
    %14 = arith.addf %12, %13 : vector<128x128xf32>
    %cst_11 = arith.constant 0.000000e+00 : f32
    %15 = vector.broadcast %cst_11 : f32 to vector<128x128xf32>
    %16 = arith.maximumf %14, %15 : vector<128x128xf32>
    %c0_12 = arith.constant 0 : index
    %c0_13 = arith.constant 0 : index
    %17 = vector.load %arg6[%c0_12, %c0_13] : memref<128x128xf32, #tpu.memory_space<vmem>>, vector<128x128xf32>
    tpu.vector_store %arg6[%c0_12, %c0_13], %16 {strides = array<i32>} : memref<128x128xf32, #tpu.memory_space<vmem>>, vector<128x128xf32>,
    return
  }
  func.func @transform_0(%arg0: i32) -> (i32, i32) {
    %c0_i32 = arith.constant 0 : i32
    %c0_i32_0 = arith.constant 0 : i32
    return %arg0, %c0_i32 : i32, i32
  }
  func.func @transform_1(%arg0: i32) -> (i32, i32) {
    %c0_i32 = arith.constant 0 : i32
    %c0_i32_0 = arith.constant 0 : i32
    %c0_i32_1 = arith.constant 0 : i32
    return %c0_i32, %c0_i32_0 : i32, i32
  }
  func.func @transform_2(%arg0: i32) -> (i32, i32) {
    %c0_i32 = arith.constant 0 : i32
    %c0_i32_0 = arith.constant 0 : i32
    %c0_i32_1 = arith.constant 0 : i32
    return %c0_i32, %c0_i32_0 : i32, i32
  }
  func.func @transform_3(%arg0: i32) -> (i32, i32) {
    %c0_i32 = arith.constant 0 : i32
    %c0_i32_0 = arith.constant 0 : i32
    %c0_i32_1 = arith.constant 0 : i32
    return %c0_i32, %c0_i32_0 : i32, i32
  }
  func.func @transform_4(%arg0: i32) -> (i32, i32) {
    %c0_i32 = arith.constant 0 : i32
    %c0_i32_0 = arith.constant 0 : i32
    %c0_i32_1 = arith.constant 0 : i32
    return %c0_i32, %c0_i32_0 : i32, i32
  }
  func.func @transform_5(%arg0: i32) -> (i32, i32) {
    %c0_i32 = arith.constant 0 : i32
    %c0_i32_0 = arith.constant 0 : i32
    return %arg0, %c0_i32 : i32, i32
  }
}

module attributes {stable_mosaic.version = 11 : i64} {
  func.func @_fused_mlp_kernel(%arg0: i32, %arg1: memref<128x64xf32, #tpu.memory_space<vmem>>, %arg2: memref<64x128xbf16, #tpu.memory_space<vmem>>, %arg3: memref<1x128xf32, #tpu.memory_space<vmem>>, %arg4: memref<128x128xbf16, #tpu.memory_space<vmem>>, %arg5: memref<1x128xf32, #tpu.memory_space<vmem>>, %arg6: memref<128x128xf32, #tpu.memory_space<vmem>>) attributes {dimension_semantics = [#tpu.dimension_semantics<parallel>], iteration_bounds = array<i64: 1>, scalar_prefetch = 0 : i64, scratch_operands = 0 : i64, tpu.core_type = #tpu.core_type<tc>, window_params = [{transform_indices = @transform_0, window_bounds = array<i64: 128, 64>}, {pipeline_mode = #tpu.pipeline_mode<synchronous>, transform_indices = @transform_1, window_bounds = array<i64: 64, 128>}, {pipeline_mode = #tpu.pipeline_mode<synchronous>, transform_indices = @transform_2, window_bounds = array<i64: 1, 128>}, {pipeline_mode = #tpu.pipeline_mode<synchronous>, transform_indices = @transform_3, window_bounds = array<i64: 128, 128>}, {pipeline_mode = #tpu.pipeline_mode<synchronous>, transform_indices = @transform_4, window_bounds = array<i64: 1, 128>}, {transform_indices = @transform_5, window_bounds = array<i64: 128, 128>}]} {
    %c0 = arith.constant 0 : index
    %c0_0 = arith.constant 0 : index
    %0 = vector.load %arg1[%c0, %c0_0] : memref<128x64xf32, #tpu.memory_space<vmem>>, vector<128x64xf32>
    %c0_1 = arith.constant 0 : index
    %c0_2 = arith.constant 0 : index
    %1 = vector.load %arg2[%c0_1, %c0_2] : memref<64x128xbf16, #tpu.memory_space<vmem>>, vector<64x128xbf16>
    %c0_3 = arith.constant 0 : index
    %c0_4 = arith.constant 0 : index
    %2 = vector.load %arg3[%c0_3, %c0_4] : memref<1x128xf32, #tpu.memory_space<vmem>>, vector<1x128xf32>
    %3 = arith.truncf %0 : vector<128x64xf32> to vector<128x64xbf16>
    %cst = arith.constant dense<0.000000e+00> : vector<128x128xf32>
    %4 = tpu.matmul %3, %1, %cst {dimension_numbers = #tpu.dot_dimension_numbers<[1], [0], [0], [1], [0, 0, 1, 1], [], []>} : vector<128x64xbf16>, vector<64x128xbf16>, vector<128x128xf32> -> vector<128x128xf32>
    %5 = vector.broadcast %2 : vector<1x128xf32> to vector<128x128xf32>
    %6 = arith.addf %4, %5 : vector<128x128xf32>
    %cst_5 = arith.constant 0.000000e+00 : f32
    %7 = vector.broadcast %cst_5 : f32 to vector<128x128xf32>
    %8 = arith.maximumf %6, %7 : vector<128x128xf32>
    %c0_6 = arith.constant 0 : index
    %c0_7 = arith.constant 0 : index
    %9 = vector.load %arg4[%c0_6, %c0_7] : memref<128x128xbf16, #tpu.memory_space<vmem>>, vector<128x128xbf16>
    %c0_8 = arith.constant 0 : index
    %c0_9 = arith.constant 0 : index
    %10 = vector.load %arg5[%c0_8, %c0_9] : memref<1x128xf32, #tpu.memory_space<vmem>>, vector<1x128xf32>
    %11 = arith.truncf %8 : vector<128x128xf32> to vector<128x128xbf16>
    %cst_10 = arith.constant dense<0.000000e+00> : vector<128x128xf32>
    %12 = tpu.matmul %11, %9, %cst_10 {dimension_numbers = #tpu.dot_dimension_numbers<[1], [0], [0], [1], [0, 0, 1, 1], [], []>} : vector<128x128xbf16>, vector<128x128xbf16>, vector<128x128xf32> -> vector<128x128xf32>
    %13 = vector.broadcast %10 : vector<1x128xf32> to vector<128x128xf32>
    %14 = arith.addf %12, %13 : vector<128x128xf32>
    %cst_11 = arith.constant 0.000000e+00 : f32
    %15 = vector.broadcast %cst_11 : f32 to vector<128x128xf32>
    %16 = arith.maximumf %14, %15 : vector<128x128xf32>
    %c0_12 = arith.constant 0 : index
    %c0_13 = arith.constant 0 : index
    %17 = vector.load %arg6[%c0_12, %c0_13] : memref<128x128xf32, #tpu.memory_space<vmem>>, vector<128x128xf32>
    tpu.vector_store %arg6[%c0_12, %c0_13], %16 {strides = array<i32>} : memref<128x128xf32, #tpu.memory_space<vmem>>, vector<128x128xf32>,
    return
  }
  func.func @transform_0(%arg0: i32) -> (i32, i32) {
    %c0_i32 = arith.constant 0 : i32
    %c0_i32_0 = arith.constant 0 : i32
    return %arg0, %c0_i32 : i32, i32
  }
  func.func @transform_1(%arg0: i32) -> (i32, i32) {
    %c0_i32 = arith.constant 0 : i32
    %c0_i32_0 = arith.constant 0 : i32
    %c0_i32_1 = arith.constant 0 : i32
    return %c0_i32, %c0_i32_0 : i32, i32
  }
  func.func @transform_2(%arg0: i32) -> (i32, i32) {
    %c0_i32 = arith.constant 0 : i32
    %c0_i32_0 = arith.constant 0 : i32
    %c0_i32_1 = arith.constant 0 : i32
    return %c0_i32, %c0_i32_0 : i32, i32
  }
  func.func @transform_3(%arg0: i32) -> (i32, i32) {
    %c0_i32 = arith.constant 0 : i32
    %c0_i32_0 = arith.constant 0 : i32
    %c0_i32_1 = arith.constant 0 : i32
    return %c0_i32, %c0_i32_0 : i32, i32
  }
  func.func @transform_4(%arg0: i32) -> (i32, i32) {
    %c0_i32 = arith.constant 0 : i32
    %c0_i32_0 = arith.constant 0 : i32
    %c0_i32_1 = arith.constant 0 : i32
    return %c0_i32, %c0_i32_0 : i32, i32
  }
  func.func @transform_5(%arg0: i32) -> (i32, i32) {
    %c0_i32 = arith.constant 0 : i32
    %c0_i32_0 = arith.constant 0 : i32
    return %arg0, %c0_i32 : i32, i32
  }
}

</mosaic_0001>

<llo_original>
// kernel: tpu_custom_call.1
$region0: #{tpu_custom_call.1}
  #allocation0 [shape = 'u32[]', space=smem, size = 0x4, offset = 0x4, fixed_abs, tag = 'smem constant byte address 0x4 - core index']
  #allocation1 [shape = 'u32[72,128]{1,0:T(1,128)}', space=vmem, size = 0x9000, scoped, tag = 'internal scratch']
  %s0 = inlined_call_operand.vmem [shape: f32[128,64], index: 0, kind: input, shape index: {}]
  %s1 = inlined_call_operand.vmem [shape: bf16[64,128], index: 1, kind: input, shape index: {}]
  %s2 = inlined_call_operand.vmem [shape: f32[1,128], index: 2, kind: input, shape index: {}]
  %s3 = inlined_call_operand.vmem [shape: bf16[128,128], index: 3, kind: input, shape index: {}]
  %s4 = inlined_call_operand.vmem [shape: f32[1,128], index: 4, kind: input, shape index: {}]
  %s5 = inlined_call_operand.hbm [shape: f32[128,128], index: 5, kind: output, shape index: {}]
  %s6 = sld [smem:[#allocation0]]
  $region30: #{tpu_custom_call.1} parent=0
    _
  %s8 = ssub.s32 1, %s6
  %s9 = scalar_select 0, %s8, %s6
  $region1: #{tpu_custom_call.1} parent=0
    #allocation2 [shape = 'u8[65536]{0}', space=vmem, size = 0x10000, scoped, tag = 'output window, operand 0, single buffered']
    #allocation3 [shape = 's32[1]{0}', space=sflag, size = 0x4, scoped, tag = 'scoped memory for tpu_custom_call.1']
    %10 = vsyncpa [#allocation3], 0
    // Predicated region
    $region2: #{tpu_custom_call.1} parent=1 // pred_check
      _
    $region3: #{tpu_custom_call.1} parent=1 // pred_check_branch
      %12 = sbr.rel (0) target = $region5
    $region4: #{tpu_custom_call.1} parent=1 // pred_region
      _
    $region5: #{tpu_custom_call.1} parent=1 // pred_fallthru
      _
    // Predicated region
    $region6: #{tpu_custom_call.1} parent=1 // pred_check
      _
    $region7: #{tpu_custom_call.1} parent=1 // pred_check_branch
      %14 = sbr.rel (0) target = $region9
    $region8: #{tpu_custom_call.1} parent=1 // pred_region
      _
    $region9: #{tpu_custom_call.1} parent=1 // pred_fallthru
      _
    // Predicated region
    $region10: #{tpu_custom_call.1} parent=1 // pred_check
      _
    $region11: #{tpu_custom_call.1} parent=1 // pred_check_branch
      %16 = sbr.rel (0) target = $region13
    $region12: #{tpu_custom_call.1} parent=1 // pred_region
      _
    $region13: #{tpu_custom_call.1} parent=1 // pred_fallthru
      _
    // Predicated region
    $region14: #{tpu_custom_call.1} parent=1 // pred_check
      _
    $region15: #{tpu_custom_call.1} parent=1 // pred_check_branch
      %18 = sbr.rel (0) target = $region17
    $region16: #{tpu_custom_call.1} parent=1 // pred_region
      _
    $region17: #{tpu_custom_call.1} parent=1 // pred_fallthru
      _
    // Predicated region
    $region18: #{tpu_custom_call.1} parent=1 // pred_check
      _
    $region19: #{tpu_custom_call.1} parent=1 // pred_check_branch
      %20 = sbr.rel (0) target = $region21
    $region20: #{tpu_custom_call.1} parent=1 // pred_region
      _
    $region21: #{tpu_custom_call.1} parent=1 // pred_fallthru
      _
    %v22 = vld [vmem:[%s0] sm:$0xff]
    %v23 = vld [vmem:[%s0 + $0x8] sm:$0xff]
    %v24 = vld [vmem:[%s0 + $0x10] sm:$0xff]
    %v25 = vld [vmem:[%s0 + $0x18] sm:$0xff]
    %v26 = vld [vmem:[%s0 + $0x20] sm:$0xff]
    %v27 = vld [vmem:[%s0 + $0x28] sm:$0xff]
    %v28 = vld [vmem:[%s0 + $0x30] sm:$0xff]
    %v29 = vld [vmem:[%s0 + $0x38] sm:$0xff]
    %v30 = vld [vmem:[%s0 + $0x40] sm:$0xff]
    %v31 = vld [vmem:[%s0 + $0x48] sm:$0xff]
    %v32 = vld [vmem:[%s0 + $0x50] sm:$0xff]
    %v33 = vld [vmem:[%s0 + $0x58] sm:$0xff]
    %v34 = vld [vmem:[%s0 + $0x60] sm:$0xff]
    %v35 = vld [vmem:[%s0 + $0x68] sm:$0xff]
    %v36 = vld [vmem:[%s0 + $0x70] sm:$0xff]
    %v37 = vld [vmem:[%s0 + $0x78] sm:$0xff]
    %v38 = vld [vmem:[%s1] sm:$0xf]
    %v39 = vld [vmem:[%s1 + $0x4] sm:$0xf]
    %v40 = vld [vmem:[%s1 + $0x8] sm:$0xf]
    %v41 = vld [vmem:[%s1 + $0xc] sm:$0xf]
    %v42 = vld [vmem:[%s1 + $0x10] sm:$0xf]
    %v43 = vld [vmem:[%s1 + $0x14] sm:$0xf]
    %v44 = vld [vmem:[%s1 + $0x18] sm:$0xf]
    %v45 = vld [vmem:[%s1 + $0x1c] sm:$0xf]
    %v46 = vld [vmem:[%s2] sm:$0x1]
    %v47 = vpack.c.bf16 %v23, %v22
    %v48 = vpack.c.bf16 %v25, %v24
    %v49 = vpack.c.bf16 %v27, %v26
    %v50 = vpack.c.bf16 %v29, %v28
    %v51 = vpack.c.bf16 %v31, %v30
    %v52 = vpack.c.bf16 %v33, %v32
    %v53 = vpack.c.bf16 %v35, %v34
    %v54 = vpack.c.bf16 %v37, %v36
    %v56 = vperm.slane %v46, 0
    %v66 = vunpack.c.l.b16 %v38
    %v67 = vunpack.c.l.b16 %v39
    %v68 = vunpack.c.l.b16 %v40
    %v69 = vunpack.c.l.b16 %v41
    %v70 = vunpack.c.l.b16 %v42
    %v71 = vunpack.c.l.b16 %v43
    %v72 = vunpack.c.l.b16 %v44
    %v73 = vunpack.c.l.b16 %v45
    %v74 = vpack.c.b16 %v67, %v66
    %v75 = vpack.c.b16 %v69, %v68
    %v76 = vpack.c.b16 %v71, %v70
    %v77 = vpack.c.b16 %v73, %v72
    %vm82 = vcmask 523264
    %v84 = vsel %vm82, %v47, 0
    %v87 = vsel %vm82, %v48, 0
    %v90 = vsel %vm82, %v49, 0
    %v93 = vsel %vm82, %v50, 0
    %v96 = vsel %vm82, %v51, 0
    %v99 = vsel %vm82, %v52, 0
    %v102 = vsel %vm82, %v53, 0
    %v105 = vsel %vm82, %v54, 0
    %107 = vmatpush.bf16.msra.mxu0 0
    %108 = vmatpush.bf16.msra.mxu0 0
    %109 = vmatpush.bf16.msra.mxu0 0
    %110 = vmatpush.bf16.msra.mxu0 0
    %111 = vmatpush.bf16.msra.mxu0 %v77
    %112 = vmatpush.bf16.msra.mxu0 %v76
    %113 = vmatpush.bf16.msra.mxu0 %v75
    %114 = vmatpush.bf16.msra.mxu0 %v74
    %115 = vmatmul.bf16.gmra.mxu0 %v84
    %v116 = vpop.f32.mrf.mxu0
    %v117 = vadd.f32 %v56, %v116
    %v118 = vpop.f32.mrf.mxu0
    %v119 = vadd.f32 %v56, %v118
    %120 = vmatmul.bf16.gmra.mxu0 %v87
    %v121 = vpop.f32.mrf.mxu0
    %v122 = vadd.f32 %v56, %v121
    %v123 = vpop.f32.mrf.mxu0
    %v124 = vadd.f32 %v56, %v123
    %125 = vmatmul.bf16.gmra.mxu0 %v90
    %v126 = vpop.f32.mrf.mxu0
    %v127 = vadd.f32 %v56, %v126
    %v128 = vpop.f32.mrf.mxu0
    %v129 = vadd.f32 %v56, %v128
    %130 = vmatmul.bf16.gmra.mxu0 %v93
    %v131 = vpop.f32.mrf.mxu0
    %v132 = vadd.f32 %v56, %v131
    %v133 = vpop.f32.mrf.mxu0
    %v134 = vadd.f32 %v56, %v133
    %135 = vmatmul.bf16.gmra.mxu0 %v96
    %v136 = vpop.f32.mrf.mxu0
    %v137 = vadd.f32 %v56, %v136
    %v138 = vpop.f32.mrf.mxu0
    %v139 = vadd.f32 %v56, %v138
    %140 = vmatmul.bf16.gmra.mxu0 %v99
    %v141 = vpop.f32.mrf.mxu0
    %v142 = vadd.f32 %v56, %v141
    %v143 = vpop.f32.mrf.mxu0
    %v144 = vadd.f32 %v56, %v143
    %145 = vmatmul.bf16.gmra.mxu0 %v102
    %v146 = vpop.f32.mrf.mxu0
    %v147 = vadd.f32 %v56, %v146
    %v148 = vpop.f32.mrf.mxu0
    %v149 = vadd.f32 %v56, %v148
    %150 = vmatmul.bf16.gmra.mxu0 %v105
    %v151 = vpop.f32.mrf.mxu0
    %v152 = vadd.f32 %v56, %v151
    %v153 = vpop.f32.mrf.mxu0
    %v154 = vadd.f32 %v56, %v153
    %155 = vdwg.mxu0
    %v156 = vmax.f32 %v117, 0.0
    %v157 = vmax.f32 %v119, 0.0
    %v158 = vmax.f32 %v122, 0.0
    %v159 = vmax.f32 %v124, 0.0
    %v160 = vmax.f32 %v127, 0.0
    %v161 = vmax.f32 %v129, 0.0
    %v162 = vmax.f32 %v132, 0.0
    %v163 = vmax.f32 %v134, 0.0
    %v164 = vmax.f32 %v137, 0.0
    %v165 = vmax.f32 %v139, 0.0
    %v166 = vmax.f32 %v142, 0.0
    %v167 = vmax.f32 %v144, 0.0
    %v168 = vmax.f32 %v147, 0.0
    %v169 = vmax.f32 %v149, 0.0
    %v170 = vmax.f32 %v152, 0.0
    %v171 = vmax.f32 %v154, 0.0
    %v172 = vld [vmem:[%s3] sm:$0xf]
    %v173 = vld [vmem:[%s3 + $0x4] sm:$0xf]
    %v174 = vld [vmem:[%s3 + $0x8] sm:$0xf]
    %v175 = vld [vmem:[%s3 + $0xc] sm:$0xf]
    %v176 = vld [vmem:[%s3 + $0x10] sm:$0xf]
    %v177 = vld [vmem:[%s3 + $0x14] sm:$0xf]
    %v178 = vld [vmem:[%s3 + $0x18] sm:$0xf]
    %v179 = vld [vmem:[%s3 + $0x1c] sm:$0xf]
    %v180 = vld [vmem:[%s3 + $0x20] sm:$0xf]
    %v181 = vld [vmem:[%s3 + $0x24] sm:$0xf]
    %v182 = vld [vmem:[%s3 + $0x28] sm:$0xf]
    %v183 = vld [vmem:[%s3 + $0x2c] sm:$0xf]
    %v184 = vld [vmem:[%s3 + $0x30] sm:$0xf]
    %v185 = vld [vmem:[%s3 + $0x34] sm:$0xf]
    %v186 = vld [vmem:[%s3 + $0x38] sm:$0xf]
    %v187 = vld [vmem:[%s3 + $0x3c] sm:$0xf]
    %v188 = vld [vmem:[%s4] sm:$0x1]
    %v189 = vpack.c.bf16 %v157, %v156
    %v190 = vpack.c.bf16 %v159, %v158
    %v191 = vpack.c.bf16 %v161, %v160
    %v192 = vpack.c.bf16 %v163, %v162
    %v193 = vpack.c.bf16 %v165, %v164
    %v194 = vpack.c.bf16 %v167, %v166
    %v195 = vpack.c.bf16 %v169, %v168
    %v196 = vpack.c.bf16 %v171, %v170
    %v198 = vperm.slane %v188, 0
    %v216 = vunpack.c.l.b16 %v172
    %v217 = vunpack.c.l.b16 %v173
    %v218 = vunpack.c.l.b16 %v174
    %v219 = vunpack.c.l.b16 %v175
    %v220 = vunpack.c.l.b16 %v176
    %v221 = vunpack.c.l.b16 %v177
    %v222 = vunpack.c.l.b16 %v178
    %v223 = vunpack.c.l.b16 %v179
    %v224 = vunpack.c.l.b16 %v180
    %v225 = vunpack.c.l.b16 %v181
    %v226 = vunpack.c.l.b16 %v182
    %v227 = vunpack.c.l.b16 %v183
    %v228 = vunpack.c.l.b16 %v184
    %v229 = vunpack.c.l.b16 %v185
    %v230 = vunpack.c.l.b16 %v186
    %v231 = vunpack.c.l.b16 %v187
    %v232 = vpack.c.b16 %v217, %v216
    %v233 = vpack.c.b16 %v219, %v218
    %v234 = vpack.c.b16 %v221, %v220
    %v235 = vpack.c.b16 %v223, %v222
    %v236 = vpack.c.b16 %v225, %v224
    %v237 = vpack.c.b16 %v227, %v226
    %v238 = vpack.c.b16 %v229, %v228
    %v239 = vpack.c.b16 %v231, %v230
    %248 = vmatpush.bf16.msra.mxu0 %v239
    %249 = vmatpush.bf16.msra.mxu0 %v238
    %250 = vmatpush.bf16.msra.mxu0 %v237
    %251 = vmatpush.bf16.msra.mxu0 %v236
    %252 = vmatpush.bf16.msra.mxu0 %v235
    %253 = vmatpush.bf16.msra.mxu0 %v234
    %254 = vmatpush.bf16.msra.mxu0 %v233
    %255 = vmatpush.bf16.msra.mxu0 %v232
    %256 = vmatmul.bf16.gmra.mxu0 %v189
    %v257 = vpop.f32.mrf.mxu0
    %v258 = vadd.f32 %v198, %v257
    %v259 = vpop.f32.mrf.mxu0
    %v260 = vadd.f32 %v198, %v259
    %261 = vmatmul.bf16.gmra.mxu0 %v190
    %v262 = vpop.f32.mrf.mxu0
    %v263 = vadd.f32 %v198, %v262
    %v264 = vpop.f32.mrf.mxu0
    %v265 = vadd.f32 %v198, %v264
    %266 = vmatmul.bf16.gmra.mxu0 %v191
    %v267 = vpop.f32.mrf.mxu0
    %v268 = vadd.f32 %v198, %v267
    %v269 = vpop.f32.mrf.mxu0
    %v270 = vadd.f32 %v198, %v269
    %271 = vmatmul.bf16.gmra.mxu0 %v192
    %v272 = vpop.f32.mrf.mxu0
    %v273 = vadd.f32 %v198, %v272
    %v274 = vpop.f32.mrf.mxu0
    %v275 = vadd.f32 %v198, %v274
    %276 = vmatmul.bf16.gmra.mxu0 %v193
    %v277 = vpop.f32.mrf.mxu0
    %v278 = vadd.f32 %v198, %v277
    %v279 = vpop.f32.mrf.mxu0
    %v280 = vadd.f32 %v198, %v279
    %281 = vmatmul.bf16.gmra.mxu0 %v194
    %v282 = vpop.f32.mrf.mxu0
    %v283 = vadd.f32 %v198, %v282
    %v284 = vpop.f32.mrf.mxu0
    %v285 = vadd.f32 %v198, %v284
    %286 = vmatmul.bf16.gmra.mxu0 %v195
    %v287 = vpop.f32.mrf.mxu0
    %v288 = vadd.f32 %v198, %v287
    %v289 = vpop.f32.mrf.mxu0
    %v290 = vadd.f32 %v198, %v289
    %291 = vmatmul.bf16.gmra.mxu0 %v196
    %v292 = vpop.f32.mrf.mxu0
    %v293 = vadd.f32 %v198, %v292
    %v294 = vpop.f32.mrf.mxu0
    %v295 = vadd.f32 %v198, %v294
    %296 = vdwg.mxu0
    %v297 = vmax.f32 %v258, 0.0
    %v298 = vmax.f32 %v260, 0.0
    %v299 = vmax.f32 %v263, 0.0
    %v300 = vmax.f32 %v265, 0.0
    %v301 = vmax.f32 %v268, 0.0
    %v302 = vmax.f32 %v270, 0.0
    %v303 = vmax.f32 %v273, 0.0
    %v304 = vmax.f32 %v275, 0.0
    %v305 = vmax.f32 %v278, 0.0
    %v306 = vmax.f32 %v280, 0.0
    %v307 = vmax.f32 %v283, 0.0
    %v308 = vmax.f32 %v285, 0.0
    %v309 = vmax.f32 %v288, 0.0
    %v310 = vmax.f32 %v290, 0.0
    %v311 = vmax.f32 %v293, 0.0
    %v312 = vmax.f32 %v295, 0.0
    %313 = vst [vmem:[#allocation2] sm:$0xff] %v297
    %314 = vst [vmem:[#allocation2 + $0x8] sm:$0xff] %v298
    %315 = vst [vmem:[#allocation2 + $0x10] sm:$0xff] %v299
    %316 = vst [vmem:[#allocation2 + $0x18] sm:$0xff] %v300
    %317 = vst [vmem:[#allocation2 + $0x20] sm:$0xff] %v301
    %318 = vst [vmem:[#allocation2 + $0x28] sm:$0xff] %v302
    %319 = vst [vmem:[#allocation2 + $0x30] sm:$0xff] %v303
    %320 = vst [vmem:[#allocation2 + $0x38] sm:$0xff] %v304
    %321 = vst [vmem:[#allocation2 + $0x40] sm:$0xff] %v305
    %322 = vst [vmem:[#allocation2 + $0x48] sm:$0xff] %v306
    %323 = vst [vmem:[#allocation2 + $0x50] sm:$0xff] %v307
    %324 = vst [vmem:[#allocation2 + $0x58] sm:$0xff] %v308
    %325 = vst [vmem:[#allocation2 + $0x60] sm:$0xff] %v309
    %326 = vst [vmem:[#allocation2 + $0x68] sm:$0xff] %v310
    %327 = vst [vmem:[#allocation2 + $0x70] sm:$0xff] %v311
    %328 = vst [vmem:[#allocation2 + $0x78] sm:$0xff] %v312
    // Predicated region
    $region22: #{tpu_custom_call.1} parent=1 // pred_check
      _
    $region23: #{tpu_custom_call.1} parent=1 // pred_check_branch
      %330 = sbr.rel (0) target = $region25
    $region24: #{tpu_custom_call.1} parent=1 // pred_region
      %332 = vsyncadd [#allocation3], 0
      %s333 = sshll.u32 [#allocation2], 4
      %s334 = int_to_ptr.vmem [resolvable:$true] %s333
      %s335 = sshll.u32 %s5, 4
      %s336 = int_to_ptr.hbm [resolvable:$true] %s335
      %341 = dma.vmem_to_hbm [thread:$0]  %s334, 2048, %s336, [#allocation3], 128, 128, 8
    $region25: #{tpu_custom_call.1} parent=1 // pred_fallthru
      _
    // Predicated region
    $region26: #{tpu_custom_call.1} parent=1 // pred_check
      _
    $region27: #{tpu_custom_call.1} parent=1 // pred_check_branch
      %343 = sbr.rel (0) target = $region29
    $region28: #{tpu_custom_call.1} parent=1 // pred_region
      %345 = dma.done [#allocation3], 2048
    $region29: #{tpu_custom_call.1} parent=1 // pred_fallthru
      _
    %346 = vsyncpa [#allocation3], 1

// kernel: tpu_custom_call.1
$region0: #{tpu_custom_call.1}
  #allocation0 [shape = 'u32[]', space=smem, size = 0x4, offset = 0x4, fixed_abs, tag = 'smem constant byte address 0x4 - core index']
  #allocation1 [shape = 'u32[72,128]{1,0:T(1,128)}', space=vmem, size = 0x9000, scoped, tag = 'internal scratch']
  %s0 = inlined_call_operand.vmem [shape: f32[128,64], index: 0, kind: input, shape index: {}]
  %s1 = inlined_call_operand.vmem [shape: bf16[64,128], index: 1, kind: input, shape index: {}]
  %s2 = inlined_call_operand.vmem [shape: f32[1,128], index: 2, kind: input, shape index: {}]
  %s3 = inlined_call_operand.vmem [shape: bf16[128,128], index: 3, kind: input, shape index: {}]
  %s4 = inlined_call_operand.vmem [shape: f32[1,128], index: 4, kind: input, shape index: {}]
  %s5 = inlined_call_operand.hbm [shape: f32[128,128], index: 5, kind: output, shape index: {}]
  %s6 = sld [smem:[#allocation0]]
  $region30: #{tpu_custom_call.1} parent=0
    _
  %s8 = ssub.s32 1, %s6
  %s9 = scalar_select 0, %s8, %s6
  $region1: #{tpu_custom_call.1} parent=0
    #allocation2 [shape = 'u8[65536]{0}', space=vmem, size = 0x10000, scoped, tag = 'output window, operand 0, single buffered']
    #allocation3 [shape = 's32[1]{0}', space=sflag, size = 0x4, scoped, tag = 'scoped memory for tpu_custom_call.1']
    %10 = vsyncpa [#allocation3], 0
    // Predicated region
    $region2: #{tpu_custom_call.1} parent=1 // pred_check
      _
    $region3: #{tpu_custom_call.1} parent=1 // pred_check_branch
      %12 = sbr.rel (0) target = $region5
    $region4: #{tpu_custom_call.1} parent=1 // pred_region
      _
    $region5: #{tpu_custom_call.1} parent=1 // pred_fallthru
      _
    // Predicated region
    $region6: #{tpu_custom_call.1} parent=1 // pred_check
      _
    $region7: #{tpu_custom_call.1} parent=1 // pred_check_branch
      %14 = sbr.rel (0) target = $region9
    $region8: #{tpu_custom_call.1} parent=1 // pred_region
      _
    $region9: #{tpu_custom_call.1} parent=1 // pred_fallthru
      _
    // Predicated region
    $region10: #{tpu_custom_call.1} parent=1 // pred_check
      _
    $region11: #{tpu_custom_call.1} parent=1 // pred_check_branch
      %16 = sbr.rel (0) target = $region13
    $region12: #{tpu_custom_call.1} parent=1 // pred_region
      _
    $region13: #{tpu_custom_call.1} parent=1 // pred_fallthru
      _
    // Predicated region
    $region14: #{tpu_custom_call.1} parent=1 // pred_check
      _
    $region15: #{tpu_custom_call.1} parent=1 // pred_check_branch
      %18 = sbr.rel (0) target = $region17
    $region16: #{tpu_custom_call.1} parent=1 // pred_region
      _
    $region17: #{tpu_custom_call.1} parent=1 // pred_fallthru
      _
    // Predicated region
    $region18: #{tpu_custom_call.1} parent=1 // pred_check
      _
    $region19: #{tpu_custom_call.1} parent=1 // pred_check_branch
      %20 = sbr.rel (0) target = $region21
    $region20: #{tpu_custom_call.1} parent=1 // pred_region
      _
    $region21: #{tpu_custom_call.1} parent=1 // pred_fallthru
      _
    %v22 = vld [vmem:[%s0] sm:$0xff]
    %v23 = vld [vmem:[%s0 + $0x8] sm:$0xff]
    %v24 = vld [vmem:[%s0 + $0x10] sm:$0xff]
    %v25 = vld [vmem:[%s0 + $0x18] sm:$0xff]
    %v26 = vld [vmem:[%s0 + $0x20] sm:$0xff]
    %v27 = vld [vmem:[%s0 + $0x28] sm:$0xff]
    %v28 = vld [vmem:[%s0 + $0x30] sm:$0xff]
    %v29 = vld [vmem:[%s0 + $0x38] sm:$0xff]
    %v30 = vld [vmem:[%s0 + $0x40] sm:$0xff]
    %v31 = vld [vmem:[%s0 + $0x48] sm:$0xff]
    %v32 = vld [vmem:[%s0 + $0x50] sm:$0xff]
    %v33 = vld [vmem:[%s0 + $0x58] sm:$0xff]
    %v34 = vld [vmem:[%s0 + $0x60] sm:$0xff]
    %v35 = vld [vmem:[%s0 + $0x68] sm:$0xff]
    %v36 = vld [vmem:[%s0 + $0x70] sm:$0xff]
    %v37 = vld [vmem:[%s0 + $0x78] sm:$0xff]
    %v38 = vld [vmem:[%s1] sm:$0xf]
    %v39 = vld [vmem:[%s1 + $0x4] sm:$0xf]
    %v40 = vld [vmem:[%s1 + $0x8] sm:$0xf]
    %v41 = vld [vmem:[%s1 + $0xc] sm:$0xf]
    %v42 = vld [vmem:[%s1 + $0x10] sm:$0xf]
    %v43 = vld [vmem:[%s1 + $0x14] sm:$0xf]
    %v44 = vld [vmem:[%s1 + $0x18] sm:$0xf]
    %v45 = vld [vmem:[%s1 + $0x1c] sm:$0xf]
    %v46 = vld [vmem:[%s2] sm:$0x1]
    %v47 = vpack.c.bf16 %v23, %v22
    %v48 = vpack.c.bf16 %v25, %v24
    %v49 = vpack.c.bf16 %v27, %v26
    %v50 = vpack.c.bf16 %v29, %v28
    %v51 = vpack.c.bf16 %v31, %v30
    %v52 = vpack.c.bf16 %v33, %v32
    %v53 = vpack.c.bf16 %v35, %v34
    %v54 = vpack.c.bf16 %v37, %v36
    %v56 = vperm.slane %v46, 0
    %v66 = vunpack.c.l.b16 %v38
    %v67 = vunpack.c.l.b16 %v39
    %v68 = vunpack.c.l.b16 %v40
    %v69 = vunpack.c.l.b16 %v41
    %v70 = vunpack.c.l.b16 %v42
    %v71 = vunpack.c.l.b16 %v43
    %v72 = vunpack.c.l.b16 %v44
    %v73 = vunpack.c.l.b16 %v45
    %v74 = vpack.c.b16 %v67, %v66
    %v75 = vpack.c.b16 %v69, %v68
    %v76 = vpack.c.b16 %v71, %v70
    %v77 = vpack.c.b16 %v73, %v72
    %vm82 = vcmask 523264
    %v84 = vsel %vm82, %v47, 0
    %v87 = vsel %vm82, %v48, 0
    %v90 = vsel %vm82, %v49, 0
    %v93 = vsel %vm82, %v50, 0
    %v96 = vsel %vm82, %v51, 0
    %v99 = vsel %vm82, %v52, 0
    %v102 = vsel %vm82, %v53, 0
    %v105 = vsel %vm82, %v54, 0
    %107 = vmatpush.bf16.msra.mxu0 0
    %108 = vmatpush.bf16.msra.mxu0 0
    %109 = vmatpush.bf16.msra.mxu0 0
    %110 = vmatpush.bf16.msra.mxu0 0
    %111 = vmatpush.bf16.msra.mxu0 %v77
    %112 = vmatpush.bf16.msra.mxu0 %v76
    %113 = vmatpush.bf16.msra.mxu0 %v75
    %114 = vmatpush.bf16.msra.mxu0 %v74
    %115 = vmatmul.bf16.gmra.mxu0 %v84
    %v116 = vpop.f32.mrf.mxu0
    %v117 = vadd.f32 %v56, %v116
    %v118 = vpop.f32.mrf.mxu0
    %v119 = vadd.f32 %v56, %v118
    %120 = vmatmul.bf16.gmra.mxu0 %v87
    %v121 = vpop.f32.mrf.mxu0
    %v122 = vadd.f32 %v56, %v121
    %v123 = vpop.f32.mrf.mxu0
    %v124 = vadd.f32 %v56, %v123
    %125 = vmatmul.bf16.gmra.mxu0 %v90
    %v126 = vpop.f32.mrf.mxu0
    %v127 = vadd.f32 %v56, %v126
    %v128 = vpop.f32.mrf.mxu0
    %v129 = vadd.f32 %v56, %v128
    %130 = vmatmul.bf16.gmra.mxu0 %v93
    %v131 = vpop.f32.mrf.mxu0
    %v132 = vadd.f32 %v56, %v131
    %v133 = vpop.f32.mrf.mxu0
    %v134 = vadd.f32 %v56, %v133
    %135 = vmatmul.bf16.gmra.mxu0 %v96
    %v136 = vpop.f32.mrf.mxu0
    %v137 = vadd.f32 %v56, %v136
    %v138 = vpop.f32.mrf.mxu0
    %v139 = vadd.f32 %v56, %v138
    %140 = vmatmul.bf16.gmra.mxu0 %v99
    %v141 = vpop.f32.mrf.mxu0
    %v142 = vadd.f32 %v56, %v141
    %v143 = vpop.f32.mrf.mxu0
    %v144 = vadd.f32 %v56, %v143
    %145 = vmatmul.bf16.gmra.mxu0 %v102
    %v146 = vpop.f32.mrf.mxu0
    %v147 = vadd.f32 %v56, %v146
    %v148 = vpop.f32.mrf.mxu0
    %v149 = vadd.f32 %v56, %v148
    %150 = vmatmul.bf16.gmra.mxu0 %v105
    %v151 = vpop.f32.mrf.mxu0
    %v152 = vadd.f32 %v56, %v151
    %v153 = vpop.f32.mrf.mxu0
    %v154 = vadd.f32 %v56, %v153
    %155 = vdwg.mxu0
    %v156 = vmax.f32 %v117, 0.0
    %v157 = vmax.f32 %v119, 0.0
    %v158 = vmax.f32 %v122, 0.0
    %v159 = vmax.f32 %v124, 0.0
    %v160 = vmax.f32 %v127, 0.0
    %v161 = vmax.f32 %v129, 0.0
    %v162 = vmax.f32 %v132, 0.0
    %v163 = vmax.f32 %v134, 0.0
    %v164 = vmax.f32 %v137, 0.0
    %v165 = vmax.f32 %v139, 0.0
    %v166 = vmax.f32 %v142, 0.0
    %v167 = vmax.f32 %v144, 0.0
    %v168 = vmax.f32 %v147, 0.0
    %v169 = vmax.f32 %v149, 0.0
    %v170 = vmax.f32 %v152, 0.0
    %v171 = vmax.f32 %v154, 0.0
    %v172 = vld [vmem:[%s3] sm:$0xf]
    %v173 = vld [vmem:[%s3 + $0x4] sm:$0xf]
    %v174 = vld [vmem:[%s3 + $0x8] sm:$0xf]
    %v175 = vld [vmem:[%s3 + $0xc] sm:$0xf]
    %v176 = vld [vmem:[%s3 + $0x10] sm:$0xf]
    %v177 = vld [vmem:[%s3 + $0x14] sm:$0xf]
    %v178 = vld [vmem:[%s3 + $0x18] sm:$0xf]
    %v179 = vld [vmem:[%s3 + $0x1c] sm:$0xf]
    %v180 = vld [vmem:[%s3 + $0x20] sm:$0xf]
    %v181 = vld [vmem:[%s3 + $0x24] sm:$0xf]
    %v182 = vld [vmem:[%s3 + $0x28] sm:$0xf]
    %v183 = vld [vmem:[%s3 + $0x2c] sm:$0xf]
    %v184 = vld [vmem:[%s3 + $0x30] sm:$0xf]
    %v185 = vld [vmem:[%s3 + $0x34] sm:$0xf]
    %v186 = vld [vmem:[%s3 + $0x38] sm:$0xf]
    %v187 = vld [vmem:[%s3 + $0x3c] sm:$0xf]
    %v188 = vld [vmem:[%s4] sm:$0x1]
    %v189 = vpack.c.bf16 %v157, %v156
    %v190 = vpack.c.bf16 %v159, %v158
    %v191 = vpack.c.bf16 %v161, %v160
    %v192 = vpack.c.bf16 %v163, %v162
    %v193 = vpack.c.bf16 %v165, %v164
    %v194 = vpack.c.bf16 %v167, %v166
    %v195 = vpack.c.bf16 %v169, %v168
    %v196 = vpack.c.bf16 %v171, %v170
    %v198 = vperm.slane %v188, 0
    %v216 = vunpack.c.l.b16 %v172
    %v217 = vunpack.c.l.b16 %v173
    %v218 = vunpack.c.l.b16 %v174
    %v219 = vunpack.c.l.b16 %v175
    %v220 = vunpack.c.l.b16 %v176
    %v221 = vunpack.c.l.b16 %v177
    %v222 = vunpack.c.l.b16 %v178
    %v223 = vunpack.c.l.b16 %v179
    %v224 = vunpack.c.l.b16 %v180
    %v225 = vunpack.c.l.b16 %v181
    %v226 = vunpack.c.l.b16 %v182
    %v227 = vunpack.c.l.b16 %v183
    %v228 = vunpack.c.l.b16 %v184
    %v229 = vunpack.c.l.b16 %v185
    %v230 = vunpack.c.l.b16 %v186
    %v231 = vunpack.c.l.b16 %v187
    %v232 = vpack.c.b16 %v217, %v216
    %v233 = vpack.c.b16 %v219, %v218
    %v234 = vpack.c.b16 %v221, %v220
    %v235 = vpack.c.b16 %v223, %v222
    %v236 = vpack.c.b16 %v225, %v224
    %v237 = vpack.c.b16 %v227, %v226
    %v238 = vpack.c.b16 %v229, %v228
    %v239 = vpack.c.b16 %v231, %v230
    %248 = vmatpush.bf16.msra.mxu0 %v239
    %249 = vmatpush.bf16.msra.mxu0 %v238
    %250 = vmatpush.bf16.msra.mxu0 %v237
    %251 = vmatpush.bf16.msra.mxu0 %v236
    %252 = vmatpush.bf16.msra.mxu0 %v235
    %253 = vmatpush.bf16.msra.mxu0 %v234
    %254 = vmatpush.bf16.msra.mxu0 %v233
    %255 = vmatpush.bf16.msra.mxu0 %v232
    %256 = vmatmul.bf16.gmra.mxu0 %v189
    %v257 = vpop.f32.mrf.mxu0
    %v258 = vadd.f32 %v198, %v257
    %v259 = vpop.f32.mrf.mxu0
    %v260 = vadd.f32 %v198, %v259
    %261 = vmatmul.bf16.gmra.mxu0 %v190
    %v262 = vpop.f32.mrf.mxu0
    %v263 = vadd.f32 %v198, %v262
    %v264 = vpop.f32.mrf.mxu0
    %v265 = vadd.f32 %v198, %v264
    %266 = vmatmul.bf16.gmra.mxu0 %v191
    %v267 = vpop.f32.mrf.mxu0
    %v268 = vadd.f32 %v198, %v267
    %v269 = vpop.f32.mrf.mxu0
    %v270 = vadd.f32 %v198, %v269
    %271 = vmatmul.bf16.gmra.mxu0 %v192
    %v272 = vpop.f32.mrf.mxu0
    %v273 = vadd.f32 %v198, %v272
    %v274 = vpop.f32.mrf.mxu0
    %v275 = vadd.f32 %v198, %v274
    %276 = vmatmul.bf16.gmra.mxu0 %v193
    %v277 = vpop.f32.mrf.mxu0
    %v278 = vadd.f32 %v198, %v277
    %v279 = vpop.f32.mrf.mxu0
    %v280 = vadd.f32 %v198, %v279
    %281 = vmatmul.bf16.gmra.mxu0 %v194
    %v282 = vpop.f32.mrf.mxu0
    %v283 = vadd.f32 %v198, %v282
    %v284 = vpop.f32.mrf.mxu0
    %v285 = vadd.f32 %v198, %v284
    %286 = vmatmul.bf16.gmra.mxu0 %v195
    %v287 = vpop.f32.mrf.mxu0
    %v288 = vadd.f32 %v198, %v287
    %v289 = vpop.f32.mrf.mxu0
    %v290 = vadd.f32 %v198, %v289
    %291 = vmatmul.bf16.gmra.mxu0 %v196
    %v292 = vpop.f32.mrf.mxu0
    %v293 = vadd.f32 %v198, %v292
    %v294 = vpop.f32.mrf.mxu0
    %v295 = vadd.f32 %v198, %v294
    %296 = vdwg.mxu0
    %v297 = vmax.f32 %v258, 0.0
    %v298 = vmax.f32 %v260, 0.0
    %v299 = vmax.f32 %v263, 0.0
    %v300 = vmax.f32 %v265, 0.0
    %v301 = vmax.f32 %v268, 0.0
    %v302 = vmax.f32 %v270, 0.0
    %v303 = vmax.f32 %v273, 0.0
    %v304 = vmax.f32 %v275, 0.0
    %v305 = vmax.f32 %v278, 0.0
    %v306 = vmax.f32 %v280, 0.0
    %v307 = vmax.f32 %v283, 0.0
    %v308 = vmax.f32 %v285, 0.0
    %v309 = vmax.f32 %v288, 0.0
    %v310 = vmax.f32 %v290, 0.0
    %v311 = vmax.f32 %v293, 0.0
    %v312 = vmax.f32 %v295, 0.0
    %313 = vst [vmem:[#allocation2] sm:$0xff] %v297
    %314 = vst [vmem:[#allocation2 + $0x8] sm:$0xff] %v298
    %315 = vst [vmem:[#allocation2 + $0x10] sm:$0xff] %v299
    %316 = vst [vmem:[#allocation2 + $0x18] sm:$0xff] %v300
    %317 = vst [vmem:[#allocation2 + $0x20] sm:$0xff] %v301
    %318 = vst [vmem:[#allocation2 + $0x28] sm:$0xff] %v302
    %319 = vst [vmem:[#allocation2 + $0x30] sm:$0xff] %v303
    %320 = vst [vmem:[#allocation2 + $0x38] sm:$0xff] %v304
    %321 = vst [vmem:[#allocation2 + $0x40] sm:$0xff] %v305
    %322 = vst [vmem:[#allocation2 + $0x48] sm:$0xff] %v306
    %323 = vst [vmem:[#allocation2 + $0x50] sm:$0xff] %v307
    %324 = vst [vmem:[#allocation2 + $0x58] sm:$0xff] %v308
    %325 = vst [vmem:[#allocation2 + $0x60] sm:$0xff] %v309
    %326 = vst [vmem:[#allocation2 + $0x68] sm:$0xff] %v310
    %327 = vst [vmem:[#allocation2 + $0x70] sm:$0xff] %v311
    %328 = vst [vmem:[#allocation2 + $0x78] sm:$0xff] %v312
    // Predicated region
    $region22: #{tpu_custom_call.1} parent=1 // pred_check
      _
    $region23: #{tpu_custom_call.1} parent=1 // pred_check_branch
      %330 = sbr.rel (0) target = $region25
    $region24: #{tpu_custom_call.1} parent=1 // pred_region
      %332 = vsyncadd [#allocation3], 0
      %s333 = sshll.u32 [#allocation2], 4
      %s334 = int_to_ptr.vmem [resolvable:$true] %s333
      %s335 = sshll.u32 %s5, 4
      %s336 = int_to_ptr.hbm [resolvable:$true] %s335
      %341 = dma.vmem_to_hbm [thread:$0]  %s334, 2048, %s336, [#allocation3], 128, 128, 8
    $region25: #{tpu_custom_call.1} parent=1 // pred_fallthru
      _
    // Predicated region
    $region26: #{tpu_custom_call.1} parent=1 // pred_check
      _
    $region27: #{tpu_custom_call.1} parent=1 // pred_check_branch
      %343 = sbr.rel (0) target = $region29
    $region28: #{tpu_custom_call.1} parent=1 // pred_region
      %345 = dma.done [#allocation3], 2048
    $region29: #{tpu_custom_call.1} parent=1 // pred_fallthru
      _
    %346 = vsyncpa [#allocation3], 1

</llo_original>
